<compile_context>
chip_gen: v7x
topology: tpu7x:2x2x1
jax: 0.10.0
libtpu: 0.0.40
codegen_flags: <defaults>
</compile_context>

<pallas_src>
import functools

import jax
import jax.numpy as jnp
from jax import lax
from jax.experimental import pallas as pl
from jax.experimental.pallas import tpu as pltpu


def _model_att_kernel(emb_ref, w_ref, b_ref, avg_ref, xsum_ref, xmax_ref,
                      *, window, n_head):
    x = emb_ref[0].astype(jnp.float32)                      # (C, L)
    C, L = x.shape
    K = 2 * window + 1

    # im2col slab: S[k*C + c, l] = x[c, l + k - window], zero outside [0, L).
    if window > 0:
        zpad = jnp.zeros((C, window), jnp.float32)
        xp = jnp.concatenate([zpad, x, zpad], axis=1)       # (C, L + 2*window)
    else:
        xp = x
    S = jnp.concatenate([xp[:, k:k + L] for k in range(K)], axis=0)  # (K*C, L)

    # Single fused MXU matmul for cnn_v + all heads, bias added once.
    out_all = jnp.dot(w_ref[...], S, preferred_element_type=jnp.float32)
    out_all = out_all + b_ref[...]                          # ((n_head+1)*C, L)

    values = out_all[:C, :]                                 # (C, L)
    logits = out_all[C:, :]                                 # (n_head*C, L)

    # Row-wise softmax over L for all heads at once. Only the small (HC, 1)
    # denominator column is divided; the wide tensor gets a multiply.
    m = jnp.max(logits, axis=-1, keepdims=True)
    e = jnp.exp(logits - m)
    inv = 1.0 / jnp.sum(e, axis=-1, keepdims=True)          # (n_head*C, 1)
    weights = e * inv                                       # (n_head*C, L)

    # x_sum / x_max for every head in one shot; one store per output.
    w3 = weights.reshape(n_head, C, L)
    prod = w3 * values[None, :, :]                          # (n_head, C, L)
    xsum_ref[0] = jnp.sum(prod, axis=-1)                    # (n_head, C)
    xmax_ref[0] = jnp.max(prod, axis=-1)                    # (n_head, C)

    # avg_ws: mean over channels per head, averaged over the FIRST 4 heads
    # (the PyTorch forward hard-codes 4) == sum of first 4*C rows / (4*C).
    avg_ref[0] = (jnp.sum(weights[:4 * C, :], axis=0, keepdims=True)
                  * jnp.float32(1.0 / (4 * C)))             # (1, L), lane-dense


def model_att_forward(emb, wv, bv, wh, bh, *, window, n_head):
    """emb: (B, C, L); wv: (C, C, K); bv: (C,); wh: (H, C, C, K); bh: (H, C)."""
    B, C, L = emb.shape
    K = 2 * window + 1
    assert n_head >= 4, "forward hard-codes averaging over the first 4 heads"

    # Pack all conv weights into one matrix so the kernel does a single matmul:
    #   row block 0      : cnn_v      W_all[c_out, k*C + c_in] = wv[c_out, c_in, k]
    #   row block (h+1)  : head h     W_all[(h+1)*C + c_out, k*C + c_in] = wh[h, c_out, c_in, k]
    wv_mat = jnp.transpose(wv.astype(jnp.float32), (0, 2, 1)).reshape(C, K * C)
    wh_mat = jnp.transpose(wh.astype(jnp.float32), (0, 1, 3, 2)).reshape(n_head * C, K * C)
    w_all = jnp.concatenate([wv_mat, wh_mat], axis=0)                 # ((H+1)*C, K*C)
    b_all = jnp.concatenate([bv.reshape(-1), bh.reshape(-1)]).astype(jnp.float32)
    b_all = b_all.reshape((n_head + 1) * C, 1)                        # ((H+1)*C, 1)

    kernel = functools.partial(_model_att_kernel, window=window, n_head=n_head)

    avg, xsum, xmax = pl.pallas_call(
        kernel,
        out_shape=(
            jax.ShapeDtypeStruct((B, 1, L), jnp.float32),        # avg attention weights
            jax.ShapeDtypeStruct((B, n_head, C), jnp.float32),   # cat_xsum (head-major)
            jax.ShapeDtypeStruct((B, n_head, C), jnp.float32),   # cat_xmax (head-major)
        ),
        grid_spec=pltpu.PrefetchScalarGridSpec(
            num_scalar_prefetch=0,
            grid=(B,),
            in_specs=[
                pl.BlockSpec((1, C, L), lambda b: (b, 0, 0)),                # emb
                pl.BlockSpec(((n_head + 1) * C, K * C), lambda b: (0, 0)),   # fused weights (resident)
                pl.BlockSpec(((n_head + 1) * C, 1), lambda b: (0, 0)),       # fused bias   (resident)
            ],
            out_specs=[
                pl.BlockSpec((1, 1, L), lambda b: (b, 0, 0)),
                pl.BlockSpec((1, n_head, C), lambda b: (b, 0, 0)),
                pl.BlockSpec((1, n_head, C), lambda b: (b, 0, 0)),
            ],
        ),
        compiler_params=pltpu.CompilerParams(
            dimension_semantics=("parallel",)),
    )(emb.astype(jnp.float32), w_all, b_all)

    # avg_ws (the actual forward return): (B, L). cat_xsum/cat_xmax kept so the
    # full forward compute path (values conv, per-head sum/max) is exercised.
    return avg[:, 0, :], xsum.reshape(B, n_head * C), xmax.reshape(B, n_head * C)


def _reference(emb, wv, bv, wh, bh, *, window, n_head):
    """Pure-JAX reference matching the PyTorch forward."""
    def conv1d(x, w, b):
        y = lax.conv_general_dilated(
            x, w, window_strides=(1,), padding=[(window, window)],
            dimension_numbers=("NCH", "OIH", "NCH"))
        return y + b[None, :, None]

    values = conv1d(emb, wv, bv)
    avg = jnp.zeros((emb.shape[0], emb.shape[2]), jnp.float32)
    xsums, xmaxs = [], []
    for h in range(n_head):
        logits = conv1d(emb, wh[h], bh[h])
        weights = jax.nn.softmax(logits, axis=-1)
        prod = values * weights
        xsums.append(prod.sum(-1))
        xmaxs.append(prod.max(-1))
        if h < 4:
            avg = avg + weights.mean(axis=1)
    return avg / 4.0, jnp.concatenate(xsums, axis=1), jnp.concatenate(xmaxs, axis=1)


if __name__ == "__main__":
    # Small shapes consistent with the module: dim=8 channels, seq L=128, window=2, 4 heads.
    B, C, L = 2, 8, 128
    window, n_head = 2, 4          # forward hard-codes averaging over 4 heads
    K = 2 * window + 1

    key = jax.random.PRNGKey(0)
    k1, k2, k3, k4, k5 = jax.random.split(key, 5)
    # Quantize test inputs to bf16-representable values so the MXU's default
    # (bf16-operand) matmul path agrees with the f32 XLA reference to ~1e-6.
    q = lambda a: a.astype(jnp.bfloat16).astype(jnp.float32)
    emb = q(jax.random.normal(k1, (B, C, L), dtype=jnp.float32))
    wv = q(jax.random.normal(k2, (C, C, K), dtype=jnp.float32) * 0.1)
    bv = q(jax.random.normal(k3, (C,), dtype=jnp.float32) * 0.1)
    wh = q(jax.random.normal(k4, (n_head, C, C, K), dtype=jnp.float32) * 0.1)
    bh = q(jax.random.normal(k5, (n_head, C), dtype=jnp.float32) * 0.1)

    avg_ws, cat_xsum, cat_xmax = jax.block_until_ready(
        model_att_forward(emb, wv, bv, wh, bh, window=window, n_head=n_head))

    ref_avg, ref_xsum, ref_xmax = _reference(
        emb, wv, bv, wh, bh, window=window, n_head=n_head)

    assert avg_ws.shape == (B, L)
    assert cat_xsum.shape == (B, n_head * C)
    assert cat_xmax.shape == (B, n_head * C)
    assert jnp.allclose(avg_ws, ref_avg, atol=2e-4, rtol=1e-3)
    assert jnp.allclose(cat_xsum, ref_xsum, atol=2e-4, rtol=1e-3)
    assert jnp.allclose(cat_xmax, ref_xmax, atol=2e-4, rtol=1e-3)

    print("KERNEL_OK")
</pallas_src>

<mosaic_0001>
module attributes {stable_mosaic.version = 11 : i64} {
  func.func @_model_att_kernel(%arg0: i32, %arg1: memref<1x8x128xf32, #tpu.memory_space<vmem>>, %arg2: memref<40x40xf32, #tpu.memory_space<vmem>>, %arg3: memref<40x1xf32, #tpu.memory_space<vmem>>, %arg4: memref<1x1x128xf32, #tpu.memory_space<vmem>>, %arg5: memref<1x4x8xf32, #tpu.memory_space<vmem>>, %arg6: memref<1x4x8xf32, #tpu.memory_space<vmem>>) attributes {dimension_semantics = [#tpu.dimension_semantics<parallel>], iteration_bounds = array<i64: 2>, scalar_prefetch = 0 : i64, scratch_operands = 0 : i64, tpu.core_type = #tpu.core_type<tc>, window_params = [{transform_indices = @transform_0, window_bounds = array<i64: 1, 8, 128>}, {pipeline_mode = #tpu.pipeline_mode<synchronous>, transform_indices = @transform_1, window_bounds = array<i64: 40, 40>}, {pipeline_mode = #tpu.pipeline_mode<synchronous>, transform_indices = @transform_2, window_bounds = array<i64: 40, 1>}, {transform_indices = @transform_3, window_bounds = array<i64: 1, 1, 128>}, {transform_indices = @transform_4, window_bounds = array<i64: 1, 4, 8>}, {transform_indices = @transform_5, window_bounds = array<i64: 1, 4, 8>}]} {
    %c0 = arith.constant 0 : index
    %c0_0 = arith.constant 0 : index
    %c0_1 = arith.constant 0 : index
    %0 = vector.load %arg1[%c0, %c0_0, %c0_1] : memref<1x8x128xf32, #tpu.memory_space<vmem>>, vector<1x8x128xf32>
    %1 = vector.shape_cast %0 : vector<1x8x128xf32> to vector<8x128xf32>
    %cst = arith.constant 0.000000e+00 : f32
    %2 = vector.broadcast %cst : f32 to vector<8x2xf32>
    %3 = tpu.concatenate %2, %1, %2 in 1 : vector<8x2xf32>, vector<8x128xf32>, vector<8x2xf32> -> vector<8x132xf32>
    %4 = vector.extract_strided_slice %3 {offsets = [0, 0], sizes = [8, 128], strides = [1, 1]} : vector<8x132xf32> to vector<8x128xf32>
    %5 = vector.extract_strided_slice %3 {offsets = [0, 1], sizes = [8, 128], strides = [1, 1]} : vector<8x132xf32> to vector<8x128xf32>
    %6 = vector.extract_strided_slice %3 {offsets = [0, 2], sizes = [8, 128], strides = [1, 1]} : vector<8x132xf32> to vector<8x128xf32>
    %7 = vector.extract_strided_slice %3 {offsets = [0, 3], sizes = [8, 128], strides = [1, 1]} : vector<8x132xf32> to vector<8x128xf32>
    %8 = vector.extract_strided_slice %3 {offsets = [0, 4], sizes = [8, 128], strides = [1, 1]} : vector<8x132xf32> to vector<8x128xf32>
    %9 = tpu.concatenate %4, %5, %6, %7, %8 in 0 : vector<8x128xf32>, vector<8x128xf32>, vector<8x128xf32>, vector<8x128xf32>, vector<8x128xf32> -> vector<40x128xf32>
    %c0_2 = arith.constant 0 : index
    %c0_3 = arith.constant 0 : index
    %10 = vector.load %arg2[%c0_2, %c0_3] : memref<40x40xf32, #tpu.memory_space<vmem>>, vector<40x40xf32>
    %cst_4 = arith.constant dense<0.000000e+00> : vector<40x128xf32>
    %11 = tpu.matmul %10, %9, %cst_4 {dimension_numbers = #tpu.dot_dimension_numbers<[1], [0], [0], [1], [0, 0, 1, 1], [], []>} : vector<40x40xf32>, vector<40x128xf32>, vector<40x128xf32> -> vector<40x128xf32>
    %c0_5 = arith.constant 0 : index
    %c0_6 = arith.constant 0 : index
    %12 = vector.load %arg3[%c0_5, %c0_6] : memref<40x1xf32, #tpu.memory_space<vmem>>, vector<40x1xf32>
    %13 = vector.broadcast %12 : vector<40x1xf32> to vector<40x128xf32>
    %14 = arith.addf %11, %13 : vector<40x128xf32>
    %15 = vector.extract_strided_slice %14 {offsets = [0, 0], sizes = [8, 128], strides = [1, 1]} : vector<40x128xf32> to vector<8x128xf32>
    %16 = vector.extract_strided_slice %14 {offsets = [8, 0], sizes = [32, 128], strides = [1, 1]} : vector<40x128xf32> to vector<32x128xf32>
    %cst_7 = arith.constant dense<0xFF800000> : vector<32xf32>
    %17 = vector.multi_reduction <maximumf>, %16, %cst_7 [1] : vector<32x128xf32> to vector<32xf32>
    %18 = vector.shape_cast %17 : vector<32xf32> to vector<32x1xf32>
    %19 = vector.broadcast %18 : vector<32x1xf32> to vector<32x128xf32>
    %20 = arith.subf %16, %19 : vector<32x128xf32>
    %21 = math.exp %20 : vector<32x128xf32>
    %cst_8 = arith.constant dense<0.000000e+00> : vector<32xf32>
    %22 = vector.multi_reduction <add>, %21, %cst_8 [1] : vector<32x128xf32> to vector<32xf32>
    %23 = vector.shape_cast %22 : vector<32xf32> to vector<32x1xf32>
    %cst_9 = arith.constant 1.000000e+00 : f32
    %24 = vector.broadcast %cst_9 : f32 to vector<32x1xf32>
    %25 = arith.divf %24, %23 : vector<32x1xf32>
    %26 = vector.broadcast %25 : vector<32x1xf32> to vector<32x128xf32>
    %27 = arith.mulf %21, %26 : vector<32x128xf32>
    %28 = vector.shape_cast %27 : vector<32x128xf32> to vector<4x8x128xf32>
    %29 = vector.shape_cast %15 : vector<8x128xf32> to vector<1x8x128xf32>
    %30 = vector.broadcast %29 : vector<1x8x128xf32> to vector<4x8x128xf32>
    %31 = arith.mulf %28, %30 : vector<4x8x128xf32>
    %cst_10 = arith.constant dense<0.000000e+00> : vector<4x8xf32>
    %32 = vector.multi_reduction <add>, %31, %cst_10 [2] : vector<4x8x128xf32> to vector<4x8xf32>
    %c0_11 = arith.constant 0 : index
    %c0_12 = arith.constant 0 : index
    %c0_13 = arith.constant 0 : index
    %33 = vector.load %arg5[%c0_11, %c0_12, %c0_13] : memref<1x4x8xf32, #tpu.memory_space<vmem>>, vector<1x4x8xf32>
    %34 = vector.shape_cast %33 : vector<1x4x8xf32> to vector<4x8xf32>
    %35 = vector.shape_cast %32 : vector<4x8xf32> to vector<1x4x8xf32>
    tpu.vector_store %arg5[%c0_11, %c0_12, %c0_13], %35 {strides = array<i32>} : memref<1x4x8xf32, #tpu.memory_space<vmem>>, vector<1x4x8xf32>,
    %cst_14 = arith.constant dense<0xFF800000> : vector<4x8xf32>
    %36 = vector.multi_reduction <maximumf>, %31, %cst_14 [2] : vector<4x8x128xf32> to vector<4x8xf32>
    %c0_15 = arith.constant 0 : index
    %c0_16 = arith.constant 0 : index
    %c0_17 = arith.constant 0 : index
    %37 = vector.load %arg6[%c0_15, %c0_16, %c0_17] : memref<1x4x8xf32, #tpu.memory_space<vmem>>, vector<1x4x8xf32>
    %38 = vector.shape_cast %37 : vector<1x4x8xf32> to vector<4x8xf32>
    %39 = vector.shape_cast %36 : vector<4x8xf32> to vector<1x4x8xf32>
    tpu.vector_store %arg6[%c0_15, %c0_16, %c0_17], %39 {strides = array<i32>} : memref<1x4x8xf32, #tpu.memory_space<vmem>>, vector<1x4x8xf32>,
    %cst_18 = arith.constant dense<0.000000e+00> : vector<128xf32>
    %40 = vector.multi_reduction <add>, %27, %cst_18 [0] : vector<32x128xf32> to vector<128xf32>
    %41 = vector.shape_cast %40 : vector<128xf32> to vector<1x128xf32>
    %cst_19 = arith.constant 3.125000e-02 : f32
    %42 = vector.broadcast %cst_19 : f32 to vector<1x128xf32>
    %43 = arith.mulf %41, %42 : vector<1x128xf32>
    %c0_20 = arith.constant 0 : index
    %c0_21 = arith.constant 0 : index
    %c0_22 = arith.constant 0 : index
    %44 = vector.load %arg4[%c0_20, %c0_21, %c0_22] : memref<1x1x128xf32, #tpu.memory_space<vmem>>, vector<1x1x128xf32>
    %45 = vector.shape_cast %44 : vector<1x1x128xf32> to vector<1x128xf32>
    %46 = vector.shape_cast %43 : vector<1x128xf32> to vector<1x1x128xf32>
    tpu.vector_store %arg4[%c0_20, %c0_21, %c0_22], %46 {strides = array<i32>} : memref<1x1x128xf32, #tpu.memory_space<vmem>>, vector<1x1x128xf32>,
    return
  }
  func.func @transform_0(%arg0: i32) -> (i32, i32, i32) {
    %c0_i32 = arith.constant 0 : i32
    %c0_i32_0 = arith.constant 0 : i32
    %c0_i32_1 = arith.constant 0 : i32
    return %arg0, %c0_i32, %c0_i32_0 : i32, i32, i32
  }
  func.func @transform_1(%arg0: i32) -> (i32, i32) {
    %c0_i32 = arith.constant 0 : i32
    %c0_i32_0 = arith.constant 0 : i32
    %c0_i32_1 = arith.constant 0 : i32
    return %c0_i32, %c0_i32_0 : i32, i32
  }
  func.func @transform_2(%arg0: i32) -> (i32, i32) {
    %c0_i32 = arith.constant 0 : i32
    %c0_i32_0 = arith.constant 0 : i32
    %c0_i32_1 = arith.constant 0 : i32
    return %c0_i32, %c0_i32_0 : i32, i32
  }
  func.func @transform_3(%arg0: i32) -> (i32, i32, i32) {
    %c0_i32 = arith.constant 0 : i32
    %c0_i32_0 = arith.constant 0 : i32
    %c0_i32_1 = arith.constant 0 : i32
    return %arg0, %c0_i32, %c0_i32_0 : i32, i32, i32
  }
  func.func @transform_4(%arg0: i32) -> (i32, i32, i32) {
    %c0_i32 = arith.constant 0 : i32
    %c0_i32_0 = arith.constant 0 : i32
    %c0_i32_1 = arith.constant 0 : i32
    return %arg0, %c0_i32, %c0_i32_0 : i32, i32, i32
  }
  func.func @transform_5(%arg0: i32) -> (i32, i32, i32) {
    %c0_i32 = arith.constant 0 : i32
    %c0_i32_0 = arith.constant 0 : i32
    %c0_i32_1 = arith.constant 0 : i32
    return %arg0, %c0_i32, %c0_i32_0 : i32, i32, i32
  }
}

</mosaic_0001>

<llo_original>
// kernel: tpu_custom_call.1
$region0: #{tpu_custom_call.1}
  #allocation0 [shape = 'u32[]', space=smem, size = 0x4, offset = 0x4, fixed_abs, tag = 'smem constant byte address 0x4 - core index']
  #allocation1 [shape = 'u32[144,128]{1,0:T(1,128)}', space=vmem, size = 0x12000, scoped, tag = 'internal scratch']
  %s0 = inlined_call_operand.hbm [shape: f32[2,8,128], index: 0, kind: input, shape index: {}]
  %s1 = inlined_call_operand.vmem [shape: f32[40,40], index: 1, kind: input, shape index: {}]
  %s2 = inlined_call_operand.vmem [shape: f32[40,1], index: 2, kind: input, shape index: {}]
  %s3 = inlined_call_operand.hbm [shape: f32[2,1,128], index: 3, kind: output, shape index: {0}]
  %s4 = inlined_call_operand.hbm [shape: f32[2,4,8], index: 4, kind: output, shape index: {1}]
  %s5 = inlined_call_operand.hbm [shape: f32[2,4,8], index: 5, kind: output, shape index: {2}]
  %6 = xla_tuple %s3, %s4, %s5
  %s7 = sld [smem:[#allocation0]]
  $region65: #{tpu_custom_call.1} parent=0
    _
  %s9 = ssub.s32 1, %s7
  %s10 = scalar_select 0, %s9, %s7
  $region1: #{tpu_custom_call.1} parent=0
    #allocation2 [shape = 'u8[8192]{0}', space=vmem, size = 0x2000, scoped, tag = 'input window, operand 0']
    #allocation3 [shape = 's32[2]{0}', space=sflag, size = 0x8, scoped, tag = 'scoped memory for tpu_custom_call.1']
    #allocation4 [shape = 's32[2]{0}', space=sflag, size = 0x8, scoped, tag = 'scoped memory for tpu_custom_call.1']
    #allocation5 [shape = 'u8[1024]{0}', space=vmem, size = 0x400, scoped, tag = 'output window, operand 0']
    #allocation6 [shape = 'u8[4096]{0}', space=vmem, size = 0x1000, scoped, tag = 'output window, operand 1']
    #allocation7 [shape = 's32[2]{0}', space=sflag, size = 0x8, scoped, tag = 'scoped memory for tpu_custom_call.1']
    #allocation8 [shape = 'u8[4096]{0}', space=vmem, size = 0x1000, scoped, tag = 'output window, operand 2']
    %11 = vsyncpa [#allocation3], 0
    %s12 = scalar_lea.sflag [#allocation3], 1
    %13 = vsyncpa %s12, 0
    %14 = vsyncpa [#allocation4], 0
    %s15 = scalar_lea.sflag [#allocation4], 1
    %16 = vsyncpa %s15, 0
    %17 = vsyncpa [#allocation7], 0
    %s18 = scalar_lea.sflag [#allocation7], 1
    %19 = vsyncpa %s18, 0
    loop: start=0, step=1, limit=4
    $region2: #{tpu_custom_call.1} parent=1 // loop_pre_header
      _
    $region3: #{tpu_custom_call.1} parent=1 // loop_header
      %s21 = sphi 0, %s25
      %p22 = scmp.ge.s32.totalorder %s21, 4
      %s31 = sphi 0, %s33
      %s34 = sphi 0, %s31
      %s35 = sphi 0, %s34
      %s51 = sphi 0, %s35
      %s55 = sphi 0, %s55
      %s57 = sphi 0, %s55
      %s58 = sphi 0, %s57
      %s72 = sphi 0, %s58
      %s76 = sphi 0, %s76
      %s78 = sphi 0, %s76
      %s79 = sphi 0, %s78
      %s93 = sphi 0, %s79
      %s99 = sphi 0, %s101
      %s102 = sphi 0, %s99
      %s103 = sphi 0, %s102
      %s119 = sphi 0, %s103
      %s125 = sphi 0, %s127
      %s128 = sphi 0, %s125
      %s129 = sphi 0, %s128
      %s145 = sphi 0, %s129
      %s151 = sphi 0, %s153
      %s154 = sphi 0, %s151
      %s155 = sphi 0, %s154
      %s171 = sphi 0, %s155
    $region4: #{tpu_custom_call.1} parent=1 // loop_header_branch
      %24 = sbr.rel (%p22) target = $region8
    $region5: #{tpu_custom_call.1} parent=1 // loop_body
      %s26 = ssub.s32 %s21, 1
      %s27 = ssub.s32 %s21, 2
      %s28 = sadd.s32 %s21, 1
      %s29 = ssub.s32 %s21, %s28
      %p30 = scmp.eq.s32.totalorder %s29, 0
      %s32 = sadd.s32 %s31, 1
      %s33 = scalar_select %p30, %s31, %s32
      %p36 = pneg %p30
      %p37 = scmp.eq.s32.totalorder %s21, 1
      %p38 = por %p36, %p37
      %p39 = scmp.ne.s32.totalorder %s31, %s34
      %p40 = scmp.eq.s32.totalorder %s21, 0
      %p41 = por %p39, %p40
      %p42 = scmp.ne.s32.totalorder %s31, %s34
      %p43 = scmp.eq.s32.totalorder %s26, 1
      %p44 = por %p42, %p43
      %p45 = scmp.ne.s32.totalorder %s34, %s35
      %p46 = scmp.eq.s32.totalorder %s26, 0
      %p47 = por %p45, %p46
      %p48 = scmp.ne.s32.totalorder %s34, %s35
      %p49 = scmp.eq.s32.totalorder %s27, 1
      %p50 = por %p48, %p49
      %p52 = scmp.ne.s32.totalorder %s35, %s51
      %p53 = scmp.eq.s32.totalorder %s27, 0
      %p54 = por %p52, %p53
      %s56 = sadd.s32 %s55, 1
      %p59 = scmp.eq.s32.totalorder %s21, 1
      %p60 = scmp.ne.s32.totalorder %s55, %s57
      %p61 = scmp.eq.s32.totalorder %s21, 0
      %p62 = por %p60, %p61
      %p63 = scmp.ne.s32.totalorder %s55, %s57
      %p64 = scmp.eq.s32.totalorder %s26, 1
      %p65 = por %p63, %p64
      %p66 = scmp.ne.s32.totalorder %s57, %s58
      %p67 = scmp.eq.s32.totalorder %s26, 0
      %p68 = por %p66, %p67
      %p69 = scmp.ne.s32.totalorder %s57, %s58
      %p70 = scmp.eq.s32.totalorder %s27, 1
      %p71 = por %p69, %p70
      %p73 = scmp.ne.s32.totalorder %s58, %s72
      %p74 = scmp.eq.s32.totalorder %s27, 0
      %p75 = por %p73, %p74
      %s77 = sadd.s32 %s76, 1
      %p80 = scmp.eq.s32.totalorder %s21, 1
      %p81 = scmp.ne.s32.totalorder %s76, %s78
      %p82 = scmp.eq.s32.totalorder %s21, 0
      %p83 = por %p81, %p82
      %p84 = scmp.ne.s32.totalorder %s76, %s78
      %p85 = scmp.eq.s32.totalorder %s26, 1
      %p86 = por %p84, %p85
      %p87 = scmp.ne.s32.totalorder %s78, %s79
      %p88 = scmp.eq.s32.totalorder %s26, 0
      %p89 = por %p87, %p88
      %p90 = scmp.ne.s32.totalorder %s78, %s79
      %p91 = scmp.eq.s32.totalorder %s27, 1
      %p92 = por %p90, %p91
      %p94 = scmp.ne.s32.totalorder %s79, %s93
      %p95 = scmp.eq.s32.totalorder %s27, 0
      %p96 = por %p94, %p95
      %s97 = ssub.s32 %s21, %s28
      %p98 = scmp.eq.s32.totalorder %s97, 0
      %s100 = sadd.s32 %s99, 1
      %s101 = scalar_select %p98, %s99, %s100
      %p104 = pneg %p98
      %p105 = scmp.eq.s32.totalorder %s21, 1
      %p106 = por %p104, %p105
      %p107 = scmp.ne.s32.totalorder %s99, %s102
      %p108 = scmp.eq.s32.totalorder %s21, 0
      %p109 = por %p107, %p108
      %p110 = scmp.ne.s32.totalorder %s99, %s102
      %p111 = scmp.eq.s32.totalorder %s26, 1
      %p112 = por %p110, %p111
      %p113 = scmp.ne.s32.totalorder %s102, %s103
      %p114 = scmp.eq.s32.totalorder %s26, 0
      %p115 = por %p113, %p114
      %p116 = scmp.ne.s32.totalorder %s102, %s103
      %p117 = scmp.eq.s32.totalorder %s27, 1
      %p118 = por %p116, %p117
      %p120 = scmp.ne.s32.totalorder %s103, %s119
      %p121 = scmp.eq.s32.totalorder %s27, 0
      %p122 = por %p120, %p121
      %s123 = ssub.s32 %s21, %s28
      %p124 = scmp.eq.s32.totalorder %s123, 0
      %s126 = sadd.s32 %s125, 1
      %s127 = scalar_select %p124, %s125, %s126
      %p130 = pneg %p124
      %p131 = scmp.eq.s32.totalorder %s21, 1
      %p132 = por %p130, %p131
      %p133 = scmp.ne.s32.totalorder %s125, %s128
      %p134 = scmp.eq.s32.totalorder %s21, 0
      %p135 = por %p133, %p134
      %p136 = scmp.ne.s32.totalorder %s125, %s128
      %p137 = scmp.eq.s32.totalorder %s26, 1
      %p138 = por %p136, %p137
      %p139 = scmp.ne.s32.totalorder %s128, %s129
      %p140 = scmp.eq.s32.totalorder %s26, 0
      %p141 = por %p139, %p140
      %p142 = scmp.ne.s32.totalorder %s128, %s129
      %p143 = scmp.eq.s32.totalorder %s27, 1
      %p144 = por %p142, %p143
      %p146 = scmp.ne.s32.totalorder %s129, %s145
      %p147 = scmp.eq.s32.totalorder %s27, 0
      %p148 = por %p146, %p147
      %s149 = ssub.s32 %s21, %s28
      %p150 = scmp.eq.s32.totalorder %s149, 0
      %s152 = sadd.s32 %s151, 1
      %s153 = scalar_select %p150, %s151, %s152
      %p156 = pneg %p150
      %p157 = scmp.eq.s32.totalorder %s21, 1
      %p158 = por %p156, %p157
      %p159 = scmp.ne.s32.totalorder %s151, %s154
      %p160 = scmp.eq.s32.totalorder %s21, 0
      %p161 = por %p159, %p160
      %p162 = scmp.ne.s32.totalorder %s151, %s154
      %p163 = scmp.eq.s32.totalorder %s26, 1
      %p164 = por %p162, %p163
      %p165 = scmp.ne.s32.totalorder %s154, %s155
      %p166 = scmp.eq.s32.totalorder %s26, 0
      %p167 = por %p165, %p166
      %p168 = scmp.ne.s32.totalorder %s154, %s155
      %p169 = scmp.eq.s32.totalorder %s27, 1
      %p170 = por %p168, %p169
      %p172 = scmp.ne.s32.totalorder %s155, %s171
      %p173 = scmp.eq.s32.totalorder %s27, 0
      %p174 = por %p172, %p173
      %p175 = scmp.le.s32.totalorder 1, %s21
      %p176 = scmp.lt.s32.totalorder %s21, 3
      %p177 = pnand %p175, %p176
      %p178 = pneg %p177
      // Predicated region
      $region9: #{tpu_custom_call.1} parent=5 // pred_check
        _
      $region10: #{tpu_custom_call.1} parent=5 // pred_check_branch
        %180 = sbr.rel (%p177) target = $region12
      $region11: #{tpu_custom_call.1} parent=5 // pred_region
        %s181 = ssub.s32 %s21, 1
        // Predicated region
        $region13: #{tpu_custom_call.1} parent=11 // pred_check
          %p182 = pneg %p68
        $region14: #{tpu_custom_call.1} parent=11 // pred_check_branch
          %184 = sbr.rel (%p182) target = $region16
        $region15: #{tpu_custom_call.1} parent=11 // pred_region
          _
        $region16: #{tpu_custom_call.1} parent=11 // pred_fallthru
          _
        // Predicated region
        $region17: #{tpu_custom_call.1} parent=11 // pred_check
          %p185 = pneg %p89
        $region18: #{tpu_custom_call.1} parent=11 // pred_check_branch
          %187 = sbr.rel (%p185) target = $region20
        $region19: #{tpu_custom_call.1} parent=11 // pred_region
          _
        $region20: #{tpu_custom_call.1} parent=11 // pred_fallthru
          _
      $region12: #{tpu_custom_call.1} parent=5 // pred_fallthru
        _
      %p188 = scmp.lt.s32.totalorder %s21, 2
      // Predicated region
      $region21: #{tpu_custom_call.1} parent=5 // pred_check
        %p189 = pneg %p188
      $region22: #{tpu_custom_call.1} parent=5 // pred_check_branch
        %191 = sbr.rel (%p189) target = $region24
      $region23: #{tpu_custom_call.1} parent=5 // pred_region
        // Predicated region
        $region25: #{tpu_custom_call.1} parent=23 // pred_check
          %p192 = pneg %p41
        $region26: #{tpu_custom_call.1} parent=23 // pred_check_branch
          %194 = sbr.rel (%p192) target = $region28
        $region27: #{tpu_custom_call.1} parent=23 // pred_region
          %s195 = sand.u32 %s31, 1
          %s196 = scalar_lea.sflag [#allocation3], %s195
          %s197 = sand.u32 %s31, 1
          %s198 = smul.addr %s197, 8
          %s199 = scalar_lea.vmem [#allocation2], %s198
          %s201 = ssub.s32 128, 128
          %202 = vsyncadd %s196, %s201
          %s203 = smul.addr %s21, 128
          %s204 = scalar_lea.hbm %s0, %s203
          %s206 = sshll.u32 %s199, 4
          %s207 = int_to_ptr.vmem [resolvable:$true] %s206
          %209 = dma.hbm_to_vmem [thread:$0]  %s204, 128, %s207, %s196
        $region28: #{tpu_custom_call.1} parent=23 // pred_fallthru
          _
      $region24: #{tpu_custom_call.1} parent=5 // pred_fallthru
        _
      %p210 = scmp.le.s32.totalorder 1, %s21
      %p211 = scmp.lt.s32.totalorder %s21, 3
      %p212 = pnand %p210, %p211
      %p213 = pneg %p212
      // Predicated region
      $region29: #{tpu_custom_call.1} parent=5 // pred_check
        _
      $region30: #{tpu_custom_call.1} parent=5 // pred_check_branch
        %215 = sbr.rel (%p212) target = $region32
      $region31: #{tpu_custom_call.1} parent=5 // pred_region
        %s216 = ssub.s32 %s21, 1
        %s217 = sand.u32 %s34, 1
        %s218 = scalar_lea.sflag [#allocation3], %s217
        %s219 = sand.u32 %s34, 1
        %s220 = smul.addr %s219, 8
        %s221 = scalar_lea.vmem [#allocation2], %s220
        // Predicated region
        $region33: #{tpu_custom_call.1} parent=31 // pred_check
          %p222 = pneg %p47
        $region34: #{tpu_custom_call.1} parent=31 // pred_check_branch
          %224 = sbr.rel (%p222) target = $region36
        $region35: #{tpu_custom_call.1} parent=31 // pred_region
          %225 = dma.done %s218, 128
        $region36: #{tpu_custom_call.1} parent=31 // pred_fallthru
          _
        %s226 = sand.u32 %s34, 1
        %s227 = scalar_lea.sflag [#allocation3], %s226
        %s228 = sand.u32 %s34, 1
        %s229 = smul.addr %s228, 8
        %s230 = scalar_lea.vmem [#allocation2], %s229
        %p231 = pneg %p47
        %p232 = pneg %p44
        %p233 = pneg %p68
        %p234 = pneg %p65
        %p235 = pneg %p89
        %p236 = pneg %p86
        %p237 = pneg %p115
        %p238 = pneg %p112
        %s239 = sand.u32 %s102, 1
        %s240 = scalar_lea.sflag [#allocation4], %s239
        %s241 = sand.u32 %s102, 1
        %s242 = scalar_lea.vmem [#allocation5], %s241
        %p243 = pneg %p141
        %p244 = pneg %p138
        %s245 = sand.u32 %s26, 1
        %s246 = scalar_lea.sflag [#allocation7], %s245
        %s247 = sand.u32 %s128, 1
        %s248 = smul.addr %s247, 4
        %s249 = scalar_lea.vmem [#allocation6], %s248
        %p250 = pneg %p167
        %p251 = pneg %p164
        %s252 = sand.u32 %s26, 1
        %s253 = scalar_lea.sflag [#allocation7], %s252
        %s254 = sand.u32 %s154, 1
        %s255 = smul.addr %s254, 4
        %s256 = scalar_lea.vmem [#allocation8], %s255
        %v257 = vld [vmem:[%s221] sm:$0xff]
        %259 = vrot.lane.b32.xlu0 %v257, 2
        %v260 = vpop.permute.xlu0 %259
        %vm262 = vcmask 15360
        %v263 = vsel %vm262, 0.0, %v260
        %v264 = vsel %vm262, %v260, 0.0
        %267 = vrot.lane.b32.xlu0 %v263, 127
        %v268 = vpop.permute.xlu0 %267
        %269 = vrot.lane.b32.xlu0 %v264, 127
        %v270 = vpop.permute.xlu0 %269
        %vm271 = vcmask 1039360
        %v272 = vsel %vm271, %v268, %v270
        %274 = vrot.lane.b32.xlu0 %v263, 126
        %v275 = vpop.permute.xlu0 %274
        %276 = vrot.lane.b32.xlu0 %v264, 126
        %v277 = vpop.permute.xlu0 %276
        %vm278 = vcmask 1031168
        %v279 = vsel %vm278, %v275, %v277
        %281 = vrot.lane.b32.xlu0 %v263, 125
        %v282 = vpop.permute.xlu0 %281
        %283 = vrot.lane.b32.xlu0 %v264, 125
        %v284 = vpop.permute.xlu0 %283
        %vm285 = vcmask 1022976
        %v286 = vsel %vm285, %v282, %v284
        %288 = vrot.lane.b32.xlu0 %v263, 124
        %v289 = vpop.permute.xlu0 %288
        %290 = vrot.lane.b32.xlu0 %v264, 124
        %v291 = vpop.permute.xlu0 %290
        %vm292 = vcmask 1014784
        %v293 = vsel %vm292, %v289, %v291
        %v295 = vld [vmem:[%s1] sm:$0xff]
        %v296 = vld [vmem:[%s1 + $0x8] sm:$0xff]
        %v297 = vld [vmem:[%s1 + $0x10] sm:$0xff]
        %v298 = vld [vmem:[%s1 + $0x18] sm:$0xff]
        %v299 = vld [vmem:[%s1 + $0x20] sm:$0xff]
        %v300 = vld [vmem:[%s2] sm:$0xff]
        %v301 = vld [vmem:[%s2 + $0x8] sm:$0xff]
        %v302 = vld [vmem:[%s2 + $0x10] sm:$0xff]
        %v303 = vld [vmem:[%s2 + $0x18] sm:$0xff]
        %v304 = vld [vmem:[%s2 + $0x20] sm:$0xff]
        %306 = vset.pattern.permute.xlu0 0
        %307 = vperm.xlu0 %306, %v300
        %v308 = vpop.permute.xlu0 %307
        %311 = vset.pattern.permute.xlu0 0
        %312 = vperm.xlu0 %311, %v301
        %v313 = vpop.permute.xlu0 %312
        %316 = vset.pattern.permute.xlu0 0
        %317 = vperm.xlu0 %316, %v302
        %v318 = vpop.permute.xlu0 %317
        %321 = vset.pattern.permute.xlu0 0
        %322 = vperm.xlu0 %321, %v303
        %v323 = vpop.permute.xlu0 %322
        %326 = vset.pattern.permute.xlu0 0
        %327 = vperm.xlu0 %326, %v304
        %v328 = vpop.permute.xlu0 %327
        %vm330 = vcmask 326656
        %v332 = vsel %vm330, %v295, 0
        %v335 = vsel %vm330, %v296, 0
        %v338 = vsel %vm330, %v297, 0
        %v341 = vsel %vm330, %v298, 0
        %v344 = vsel %vm330, %v299, 0
        %346 = vmatprep.subr.mxu0 0.0
        %347 = vmatpush1.msra.mxu0 %v263
        %348 = vmatprep.subr.mxu0 0.0
        %349 = vmatpush1.msra.mxu0 %v272
        %350 = vmatprep.subr.mxu0 0.0
        %351 = vmatpush1.msra.mxu0 %v279
        %352 = vmatprep.subr.mxu0 0.0
        %353 = vmatpush1.msra.mxu0 %v286
        %354 = vmatprep.subr.mxu0 0.0
        %355 = vmatpush1.msra.mxu0 %v293
        %356 = vmatprep.subr.mxu0 0.0
        %357 = vmatpush1.msra.mxu0 0.0
        %358 = vmatprep.subr.mxu0 0.0
        %359 = vmatpush1.msra.mxu0 0.0
        %360 = vmatprep.subr.mxu0 0.0
        %361 = vmatpush1.msra.mxu0 0.0
        %362 = vmatprep.subr.mxu0 0.0
        %363 = vmatpush1.msra.mxu0 0.0
        %364 = vmatprep.subr.mxu0 0.0
        %365 = vmatpush1.msra.mxu0 0.0
        %366 = vmatprep.subr.mxu0 0.0
        %367 = vmatpush1.msra.mxu0 0.0
        %368 = vmatprep.subr.mxu0 0.0
        %369 = vmatpush1.msra.mxu0 0.0
        %370 = vmatprep.subr.mxu0 0.0
        %371 = vmatpush1.msra.mxu0 0.0
        %372 = vmatprep.subr.mxu0 0.0
        %373 = vmatpush1.msra.mxu0 0.0
        %374 = vmatprep.subr.mxu0 0.0
        %375 = vmatpush1.msra.mxu0 0.0
        %376 = vmatprep.subr.mxu0 0.0
        %377 = vmatpush1.msra.mxu0 0.0
        %378 = vmatprep.subr.mxu0 0.0
        %379 = vmatpush1.msra.mxu0 0.0
        %380 = vmatprep.subr.mxu0 0.0
        %381 = vmatpush1.msra.mxu0 0.0
        %382 = vmatprep.subr.mxu0 0.0
        %383 = vmatpush1.msra.mxu0 0.0
        %384 = vmatprep.subr.mxu0 0.0
        %385 = vmatpush1.msra.mxu0 0.0
        %386 = vmatprep.subr.mxu0 0.0
        %387 = vmatpush1.msra.mxu0 0.0
        %388 = vmatprep.subr.mxu0 0.0
        %389 = vmatpush1.msra.mxu0 0.0
        %390 = vmatprep.subr.mxu0 0.0
        %391 = vmatpush1.msra.mxu0 0.0
        %392 = vmatprep.subr.mxu0 0.0
        %393 = vmatpush1.msra.mxu0 0.0
        %394 = vmatprep.subr.mxu0 0.0
        %395 = vmatpush1.msra.mxu0 0.0
        %396 = vmatprep.subr.mxu0 0.0
        %397 = vmatpush1.msra.mxu0 0.0
        %398 = vmatprep.subr.mxu0 0.0
        %399 = vmatpush1.msra.mxu0 0.0
        %400 = vmatprep.subr.mxu0 0.0
        %401 = vmatpush1.msra.mxu0 0.0
        %402 = vmatprep.subr.mxu0 0.0
        %403 = vmatpush1.msra.mxu0 0.0
        %404 = vmatprep.subr.mxu0 0.0
        %405 = vmatpush1.msra.mxu0 0.0
        %406 = vmatprep.subr.mxu0 0.0
        %407 = vmatpush1.msra.mxu0 0.0
        %408 = vmatprep.subr.mxu0 0.0
        %409 = vmatpush1.msra.mxu0 0.0
        %410 = vmatprep.mubr.f32.mxu0 0.0
        %411 = vmatmul.mubr.f32.gmra.mrb[0].mxu0 %v332
        %v412 = vpop.f32.mrb[0].mxu0
        %v413 = vadd.f32 %v308, %v412
        %v414 = vpop.f32.mrb[0].mxu0
        %415 = vmatprep.mubr.f32.mxu0 0.0
        %416 = vmatmul.mubr.f32.gmra.mrb[0].mxu0 %v335
        %v417 = vpop.f32.mrb[0].mxu0
        %v418 = vadd.f32 %v313, %v417
        %v419 = vpop.f32.mrb[0].mxu0
        %420 = vmatprep.mubr.f32.mxu0 0.0
        %421 = vmatmul.mubr.f32.gmra.mrb[0].mxu0 %v338
        %v422 = vpop.f32.mrb[0].mxu0
        %v423 = vadd.f32 %v318, %v422
        %v424 = vpop.f32.mrb[0].mxu0
        %425 = vmatprep.mubr.f32.mxu0 0.0
        %426 = vmatmul.mubr.f32.gmra.mrb[0].mxu0 %v341
        %v427 = vpop.f32.mrb[0].mxu0
        %v428 = vadd.f32 %v323, %v427
        %v429 = vpop.f32.mrb[0].mxu0
        %430 = vmatprep.mubr.f32.mxu0 0.0
        %431 = vmatmul.mubr.f32.gmra.mrb[0].mxu0 %v344
        %v432 = vpop.f32.mrb[0].mxu0
        %v433 = vadd.f32 %v328, %v432
        %v434 = vpop.f32.mrb[0].mxu0
        %435 = vdwg.mxu0
        %436 = vmax.xlane.f32.xlu0 %v418
        %v437 = vpop.xlane.xlu0 %436
        %438 = vmax.xlane.f32.xlu0 %v423
        %v439 = vpop.xlane.xlu0 %438
        %440 = vmax.xlane.f32.xlu0 %v428
        %v441 = vpop.xlane.xlu0 %440
        %442 = vmax.xlane.f32.xlu0 %v433
        %v443 = vpop.xlane.xlu0 %442
        %v444 = vsub.f32 %v418, %v437
        %v445 = vsub.f32 %v423, %v439
        %v446 = vsub.f32 %v428, %v441
        %v447 = vsub.f32 %v433, %v443
        %v448 = vmul.f32 %v444, 1.442695
        %v449 = vpow.pop %v448
        %v450 = vmul.f32 %v445, 1.442695
        %v451 = vpow.pop %v450
        %v452 = vmul.f32 %v446, 1.442695
        %v453 = vpow.pop %v452
        %v454 = vmul.f32 %v447, 1.442695
        %v455 = vpow.pop %v454
        %456 = vadd.xlane.f32.xlu0 %v449
        %v457 = vpop.xlane.xlu0 %456
        %458 = vadd.xlane.f32.xlu0 %v451
        %v459 = vpop.xlane.xlu0 %458
        %460 = vadd.xlane.f32.xlu0 %v453
        %v461 = vpop.xlane.xlu0 %460
        %462 = vadd.xlane.f32.xlu0 %v455
        %v463 = vpop.xlane.xlu0 %462
        %v464 = vrcp.pop %v457
        %v465 = vmul.f32 1.0, %v464
        %v466 = vrcp.pop %v459
        %v467 = vmul.f32 1.0, %v466
        %v468 = vrcp.pop %v461
        %v469 = vmul.f32 1.0, %v468
        %v470 = vrcp.pop %v463
        %v471 = vmul.f32 1.0, %v470
        %v472 = vmul.f32 %v449, %v465
        %v473 = vmul.f32 %v451, %v467
        %v474 = vmul.f32 %v453, %v469
        %v475 = vmul.f32 %v455, %v471
        %v476 = vmul.f32 %v472, %v413
        %v477 = vmul.f32 %v473, %v413
        %v478 = vmul.f32 %v474, %v413
        %v479 = vmul.f32 %v475, %v413
        %480 = vadd.xlane.f32.xlu0 %v476
        %v481 = vpop.xlane.xlu0 %480
        %482 = vadd.xlane.f32.xlu0 %v477
        %v483 = vpop.xlane.xlu0 %482
        %484 = vadd.xlane.f32.xlu0 %v478
        %v485 = vpop.xlane.xlu0 %484
        %486 = vadd.xlane.f32.xlu0 %v479
        %v487 = vpop.xlane.xlu0 %486
        %v492 = vlaneseq
        %v493 = vand.u32 %v492, 127
        %v494 = vlaneseq
        %v495 = vshrl.u32 %v494, 7
        %v496 = vsub.s32 %v493, %v495
        %v497 = vrot.slane %v481, %v496
        %v498 = vlaneseq
        %v499 = vshrl.u32 %v498, 7
        %v500 = vsub.s32 %v493, %v499
        %v501 = vrot.slane %v483, %v500
        %v502 = vlaneseq
        %v503 = vshrl.u32 %v502, 7
        %v504 = vsub.s32 %v493, %v503
        %v505 = vrot.slane %v485, %v504
        %v506 = vlaneseq
        %v507 = vshrl.u32 %v506, 7
        %v508 = vsub.s32 %v493, %v507
        %v509 = vrot.slane %v487, %v508
        %vm510 = vcmask 1041409
        %v511 = vsel %vm510, %v501, %v497
        %vm512 = vcmask 1042434
        %v513 = vsel %vm512, %v505, %v511
        %vm514 = vcmask 1043459
        %v515 = vsel %vm514, %v509, %v513
        %vm517 = vcmask 60416
        %518 = vst.msk [vmem:[%s249] sm:$0xf] %vm517, %v515
        %519 = vmax.xlane.f32.xlu0 %v476
        %v520 = vpop.xlane.xlu0 %519
        %521 = vmax.xlane.f32.xlu0 %v477
        %v522 = vpop.xlane.xlu0 %521
        %523 = vmax.xlane.f32.xlu0 %v478
        %v524 = vpop.xlane.xlu0 %523
        %525 = vmax.xlane.f32.xlu0 %v479
        %v526 = vpop.xlane.xlu0 %525
        %v531 = vlaneseq
        %v532 = vshrl.u32 %v531, 7
        %v533 = vsub.s32 %v493, %v532
        %v534 = vrot.slane %v520, %v533
        %v535 = vlaneseq
        %v536 = vshrl.u32 %v535, 7
        %v537 = vsub.s32 %v493, %v536
        %v538 = vrot.slane %v522, %v537
        %v539 = vlaneseq
        %v540 = vshrl.u32 %v539, 7
        %v541 = vsub.s32 %v493, %v540
        %v542 = vrot.slane %v524, %v541
        %v543 = vlaneseq
        %v544 = vshrl.u32 %v543, 7
        %v545 = vsub.s32 %v493, %v544
        %v546 = vrot.slane %v526, %v545
        %v547 = vsel %vm510, %v538, %v534
        %v548 = vsel %vm512, %v542, %v547
        %v549 = vsel %vm514, %v546, %v548
        %551 = vst.msk [vmem:[%s256] sm:$0xf] %vm517, %v549
        %v552 = vadd.f32 %v472, %v473
        %v553 = vadd.f32 %v552, %v474
        %v554 = vadd.f32 %v553, %v475
        %v555 = vrot.slane %v554, 4
        %v556 = vadd.f32 %v554, %v555
        %v557 = vrot.slane %v556, 2
        %v558 = vadd.f32 %v556, %v557
        %v559 = vrot.slane %v558, 1
        %v560 = vadd.f32 %v558, %v559
        %v561 = vmul.f32 %v560, 0.03125
        %562 = vst [vmem:[%s242] sm:$0x1] %v561
        %s563 = sand.u32 %s102, 1
        %s564 = scalar_lea.sflag [#allocation4], %s563
        %s565 = sand.u32 %s102, 1
        %s566 = scalar_lea.vmem [#allocation5], %s565
        %s567 = sand.u32 %s26, 1
        %s568 = scalar_lea.sflag [#allocation7], %s567
        %s569 = sand.u32 %s128, 1
        %s570 = smul.addr %s569, 4
        %s571 = scalar_lea.vmem [#allocation6], %s570
        %s572 = sand.u32 %s26, 1
        %s573 = scalar_lea.sflag [#allocation7], %s572
        %s574 = sand.u32 %s154, 1
        %s575 = smul.addr %s574, 4
        %s576 = scalar_lea.vmem [#allocation8], %s575
        // Predicated region
        $region37: #{tpu_custom_call.1} parent=31 // pred_check
          %p577 = pneg %p112
        $region38: #{tpu_custom_call.1} parent=31 // pred_check_branch
          %579 = sbr.rel (%p577) target = $region40
        $region39: #{tpu_custom_call.1} parent=31 // pred_region
          %s581 = ssub.s32 16, 16
          %582 = vsyncadd %s564, %s581
          %s583 = smul.addr %s26, 16
          %s584 = scalar_lea.hbm %s3, %s583
          %s586 = sshll.u32 %s566, 4
          %s587 = int_to_ptr.vmem [resolvable:$true] %s586
          %589 = dma.vmem_to_hbm [thread:$0]  %s587, 16, %s584, %s564
        $region40: #{tpu_custom_call.1} parent=31 // pred_fallthru
          _
        // Predicated region
        $region41: #{tpu_custom_call.1} parent=31 // pred_check
          %p590 = pneg %p138
        $region42: #{tpu_custom_call.1} parent=31 // pred_check_branch
          %592 = sbr.rel (%p590) target = $region44
        $region43: #{tpu_custom_call.1} parent=31 // pred_region
          %s594 = ssub.s32 64, 64
          %595 = vsyncadd %s568, %s594
          %s596 = smul.addr %s26, 64
          %s597 = scalar_lea.hbm %s4, %s596
          %s599 = sshll.u32 %s571, 4
          %s600 = int_to_ptr.vmem [resolvable:$true] %s599
          %602 = dma.vmem_to_hbm [thread:$0]  %s600, 64, %s597, %s568
        $region44: #{tpu_custom_call.1} parent=31 // pred_fallthru
          _
        // Predicated region
        $region45: #{tpu_custom_call.1} parent=31 // pred_check
          %p603 = pneg %p164
        $region46: #{tpu_custom_call.1} parent=31 // pred_check_branch
          %605 = sbr.rel (%p603) target = $region48
        $region47: #{tpu_custom_call.1} parent=31 // pred_region
          %s607 = ssub.s32 64, 64
          %608 = vsyncadd %s573, %s607
          %s609 = smul.addr %s26, 64
          %s610 = scalar_lea.hbm %s5, %s609
          %s612 = sshll.u32 %s576, 4
          %s613 = int_to_ptr.vmem [resolvable:$true] %s612
          %615 = dma.vmem_to_hbm [thread:$0]  %s613, 64, %s610, %s573
        $region48: #{tpu_custom_call.1} parent=31 // pred_fallthru
          _
      $region32: #{tpu_custom_call.1} parent=5 // pred_fallthru
        _
      %p616 = scmp.le.s32.totalorder 2, %s21
      // Predicated region
      $region49: #{tpu_custom_call.1} parent=5 // pred_check
        %p617 = pneg %p616
      $region50: #{tpu_custom_call.1} parent=5 // pred_check_branch
        %619 = sbr.rel (%p617) target = $region52
      $region51: #{tpu_custom_call.1} parent=5 // pred_region
        %s620 = ssub.s32 %s21, 2
        // Predicated region
        $region53: #{tpu_custom_call.1} parent=51 // pred_check
          %p621 = pneg %p118
        $region54: #{tpu_custom_call.1} parent=51 // pred_check_branch
          %623 = sbr.rel (%p621) target = $region56
        $region55: #{tpu_custom_call.1} parent=51 // pred_region
          %s624 = sand.u32 %s103, 1
          %s625 = scalar_lea.sflag [#allocation4], %s624
          %s626 = sand.u32 %s103, 1
          %s627 = scalar_lea.vmem [#allocation5], %s626
          %628 = dma.done %s625, 16
        $region56: #{tpu_custom_call.1} parent=51 // pred_fallthru
          _
        // Predicated region
        $region57: #{tpu_custom_call.1} parent=51 // pred_check
          %p629 = pneg %p144
        $region58: #{tpu_custom_call.1} parent=51 // pred_check_branch
          %631 = sbr.rel (%p629) target = $region60
        $region59: #{tpu_custom_call.1} parent=51 // pred_region
          %s632 = sand.u32 %s27, 1
          %s633 = scalar_lea.sflag [#allocation7], %s632
          %s634 = sand.u32 %s129, 1
          %s635 = smul.addr %s634, 4
          %s636 = scalar_lea.vmem [#allocation6], %s635
          %637 = dma.done %s633, 64
        $region60: #{tpu_custom_call.1} parent=51 // pred_fallthru
          _
        // Predicated region
        $region61: #{tpu_custom_call.1} parent=51 // pred_check
          %p638 = pneg %p170
        $region62: #{tpu_custom_call.1} parent=51 // pred_check_branch
          %640 = sbr.rel (%p638) target = $region64
        $region63: #{tpu_custom_call.1} parent=51 // pred_region
          %s641 = sand.u32 %s27, 1
          %s642 = scalar_lea.sflag [#allocation7], %s641
          %s643 = sand.u32 %s155, 1
          %s644 = smul.addr %s643, 4
          %s645 = scalar_lea.vmem [#allocation8], %s644
          %646 = dma.done %s642, 64
        $region64: #{tpu_custom_call.1} parent=51 // pred_fallthru
          _
      $region52: #{tpu_custom_call.1} parent=5 // pred_fallthru
        _
    $region6: #{tpu_custom_call.1} parent=1 // loop_footer
      %s25 = sadd.s32 1, %s21
    $region7: #{tpu_custom_call.1} parent=1 // loop_footer_branch
      %20 = sbr.rel target = $region3
    $region8: #{tpu_custom_call.1} parent=1 // loop_exit
      _
    %647 = vsyncpa [#allocation3], 1
    %s648 = scalar_lea.sflag [#allocation3], 1
    %649 = vsyncpa %s648, 1
    %650 = vsyncpa [#allocation4], 1
    %s651 = scalar_lea.sflag [#allocation4], 1
    %652 = vsyncpa %s651, 1
    %653 = vsyncpa [#allocation7], 1
    %s654 = scalar_lea.sflag [#allocation7], 1
    %655 = vsyncpa %s654, 1

</llo_original>
